<compile_context>
chip_gen: v5e
topology: v5e:2x2
jax: 0.10.0
libtpu: 0.0.40
codegen_flags: <defaults>
</compile_context>

<pallas_src>
import jax
import jax.numpy as jnp
import numpy as np
from jax.experimental import pallas as pl
from jax.experimental.pallas import tpu as pltpu


# ----------------------------------------------------------------------------
# Pallas kernel: fused regressor (1x1 conv -> relu -> 1x1 conv -> relu -> 1x1
# conv) + (pred - t)^2 accumulated into a lane-dense (C_t, tm) VMEM scratch.
# Per-batch partial sums are written once, on the last pixel tile of each image.
# ----------------------------------------------------------------------------
def _vid_kernel(x_ref, t_ref, w1_ref, w2_ref, w3_ref, out_ref, acc_ref):
    j = pl.program_id(1)

    @pl.when(j == 0)
    def _():
        acc_ref[...] = jnp.zeros_like(acc_ref)

    x = x_ref[...]                                        # (c_in, tm), ingest dtype
    cdt = x.dtype
    h = jnp.dot(w1_ref[...], x, preferred_element_type=jnp.float32)
    h = jnp.maximum(h, 0.0).astype(cdt)                   # ReLU (f32 math, bf16 MXU feed)
    h = jnp.dot(w2_ref[...], h, preferred_element_type=jnp.float32)
    h = jnp.maximum(h, 0.0).astype(cdt)                   # ReLU
    pred_mean = jnp.dot(w3_ref[...], h, preferred_element_type=jnp.float32)  # (c_t, tm) f32

    diff = pred_mean - t_ref[...].astype(jnp.float32)     # upcast t after load
    acc_ref[...] += diff * diff                           # plain diff^2; var scaling hoisted out

    @pl.when(j == pl.num_programs(1) - 1)
    def _():
        # one cross-lane reduce + tiny store per image, not per tile.
        out_ref[...] = jnp.sum(acc_ref[...], axis=1, keepdims=True)   # (c_t, 1)


# ----------------------------------------------------------------------------
# Wrapper
# ----------------------------------------------------------------------------
def _adaptive_avg_pool2d(x, out_hw):
    # x: (N, C, H, W) -> (N, C, out_hw, out_hw). Integer-divisible case only.
    n, c, h, w = x.shape
    assert h % out_hw == 0 and w % out_hw == 0, "only divisible pooling supported"
    # TODO(synk): non-divisible adaptive_avg_pool2d (PyTorch uses variable windows).
    kh, kw = h // out_hw, w // out_hw
    return x.reshape(n, c, out_hw, kh, out_hw, kw).mean(axis=(3, 5))


def _round_up(v, m):
    return ((v + m - 1) // m) * m


def vid_loss(inp, target, w1, w2, w3, log_scale, *, eps=1e-5, tile_m=2048,
             vmem_limit_bytes=32 * 1024 * 1024):
    """inp: (N, C_in, H, W), target: (N, C_t, Ht, Wt) in NCHW (PyTorch convention).

    w1: (C_mid, C_in), w2: (C_mid, C_mid), w3: (C_t, C_mid) -- natural PyTorch
    conv1x1 (out, in) orientation; the kernel computes W @ X on (C, pixels) tiles.
    """
    s_H, t_H = inp.shape[2], target.shape[2]
    if s_H > t_H:
        inp = _adaptive_avg_pool2d(inp, t_H)
    elif s_H < t_H:
        target = _adaptive_avg_pool2d(target, s_H)

    n, c_in, h, w = inp.shape
    c_t, c_mid = w3.shape
    hw = h * w

    # Channels-first, lane-dense pixel axis. Free reshapes, no transpose pass.
    x3 = inp.reshape(n, c_in, hw)
    t3 = target.reshape(n, c_t, hw)

    # bf16 ingest: stream bf16 tensors as-is (half the HBM bytes); otherwise f32.
    if x3.dtype == jnp.bfloat16:
        w1f, w2f, w3f = (jnp.asarray(wi, jnp.bfloat16) for wi in (w1, w2, w3))
    else:
        if x3.dtype != jnp.float32:
            x3 = x3.astype(jnp.float32)
        w1f, w2f, w3f = (jnp.asarray(wi, jnp.float32) for wi in (w1, w2, w3))
    if t3.dtype != jnp.bfloat16 and t3.dtype != jnp.float32:
        t3 = t3.astype(jnp.float32)

    # Loop-invariant per-channel math, hoisted out of the kernel.
    pred_var = jax.nn.softplus(log_scale.astype(jnp.float32)) + jnp.float32(eps)
    half_inv_var = 0.5 / pred_var                           # (c_t,), applied once at the end
    log_var_term = 0.5 * jnp.mean(jnp.log(pred_var))        # exact analytic term

    # Pixel tiling: 128-aligned tile, pixel axis zero-padded to a multiple of it.
    # Zero pixels are exactly neutral: no conv biases => pred(0)=0, t pad=0 => diff=0.
    tm = max(128, (int(tile_m) // 128) * 128)
    tm = min(tm, _round_up(hw, 128))
    hw_pad = _round_up(hw, tm)
    if hw_pad != hw:
        pad = hw_pad - hw
        x3 = jnp.pad(x3, ((0, 0), (0, 0), (0, pad)))
        t3 = jnp.pad(t3, ((0, 0), (0, 0), (0, pad)))

    grid = (n, hw_pad // tm)

    flops = (2 * n * hw_pad * (c_in * c_mid + c_mid * c_mid + c_mid * c_t)
             + 3 * n * hw_pad * c_t)
    bytes_accessed = (n * hw_pad * (c_in * x3.dtype.itemsize + c_t * t3.dtype.itemsize)
                      + 4 * (w1f.size + w2f.size + w3f.size + n * c_t))

    partials = pl.pallas_call(
        _vid_kernel,
        out_shape=jax.ShapeDtypeStruct((n, c_t, 1), jnp.float32),
        grid_spec=pltpu.PrefetchScalarGridSpec(
            num_scalar_prefetch=0,
            grid=grid,
            in_specs=[
                pl.BlockSpec((None, c_in, tm), lambda b, j: (b, 0, j)),   # x tile
                pl.BlockSpec((None, c_t, tm), lambda b, j: (b, 0, j)),    # t tile
                pl.BlockSpec((c_mid, c_in), lambda b, j: (0, 0)),         # W1 (resident)
                pl.BlockSpec((c_mid, c_mid), lambda b, j: (0, 0)),        # W2 (resident)
                pl.BlockSpec((c_t, c_mid), lambda b, j: (0, 0)),          # W3 (resident)
            ],
            out_specs=pl.BlockSpec((None, c_t, 1), lambda b, j: (b, 0, 0)),  # per-image partials
            scratch_shapes=[pltpu.VMEM((c_t, tm), jnp.float32)],            # lane-dense f32 acc
        ),
        compiler_params=pltpu.CompilerParams(
            # batch axis "parallel": megacore sharding on v7x, no-op on v5e/v6e.
            dimension_semantics=("parallel", "arbitrary"),
            vmem_limit_bytes=int(vmem_limit_bytes),
        ),
        cost_estimate=pl.CostEstimate(
            flops=int(flops), transcendentals=0, bytes_accessed=int(bytes_accessed)),
    )(x3, t3, w1f, w2f, w3f)

    # Tiny epilogue: sum of diff^2 per channel, scaled by 0.5/var once, + log-var term.
    per_channel = jnp.sum(partials[:, :, 0], axis=0)        # (c_t,)
    total = jnp.sum(per_channel * half_inv_var)
    return total / jnp.float32(n * hw * c_t) + log_var_term


# ----------------------------------------------------------------------------
# Pure-JAX reference (mirrors the PyTorch forward) for a sanity check.
# ----------------------------------------------------------------------------
def vid_loss_ref(inp, target, w1, w2, w3, log_scale, eps=1e-5):
    s_H, t_H = inp.shape[2], target.shape[2]
    if s_H > t_H:
        inp = _adaptive_avg_pool2d(inp, t_H)
    elif s_H < t_H:
        target = _adaptive_avg_pool2d(target, s_H)
    x = jnp.transpose(inp, (0, 2, 3, 1)).astype(jnp.float32)          # NHWC
    w1f, w2f, w3f = (jnp.asarray(wi, jnp.float32) for wi in (w1, w2, w3))
    h = jnp.maximum(jnp.einsum("nhwc,dc->nhwd", x, w1f), 0.0)          # w: (out, in)
    h = jnp.maximum(jnp.einsum("nhwc,dc->nhwd", h, w2f), 0.0)
    pred_mean = jnp.einsum("nhwc,dc->nhwd", h, w3f)                    # (N,H,W,C_t)
    t = jnp.transpose(target, (0, 2, 3, 1)).astype(jnp.float32)
    pred_var = jax.nn.softplus(log_scale.astype(jnp.float32)) + eps    # (C_t,)
    nlp = 0.5 * ((pred_mean - t) ** 2 / pred_var + jnp.log(pred_var))
    return jnp.mean(nlp)


if __name__ == "__main__":
    # Small shapes consistent with the module's forward.
    N, C_IN, C_MID, C_T = 2, 4, 8, 6
    H = W = 16
    INIT_PRED_VAR, EPS = 5.0, 1e-5

    key = jax.random.PRNGKey(0)
    k1, k2, k3, k4, k5 = jax.random.split(key, 5)

    x = jax.random.normal(k1, (N, C_IN, H, W), dtype=jnp.float32)
    target = jax.random.normal(k2, (N, C_T, H, W), dtype=jnp.float32)

    # conv1x1 weights in the natural PyTorch (out, in) orientation.
    w1 = (jax.random.normal(k3, (C_MID, C_IN), dtype=jnp.float32)
          / jnp.sqrt(jnp.float32(C_IN)))
    w2 = (jax.random.normal(k4, (C_MID, C_MID), dtype=jnp.float32)
          / jnp.sqrt(jnp.float32(C_MID)))
    w3 = (jax.random.normal(k5, (C_T, C_MID), dtype=jnp.float32)
          / jnp.sqrt(jnp.float32(C_MID)))
    # log_scale = log(exp(init_pred_var - eps) - 1) * ones(C_T)
    log_scale = jnp.full(
        (C_T,), float(np.log(np.exp(INIT_PRED_VAR - EPS) - 1.0)), dtype=jnp.float32)

    loss = jax.block_until_ready(vid_loss(x, target, w1, w2, w3, log_scale, eps=EPS))
    loss_ref = jax.block_until_ready(
        vid_loss_ref(x, target, w1, w2, w3, log_scale, eps=EPS))

    # Tolerance accounts for TPU default (bf16-pass) matmul precision possibly
    # differing between the in-kernel MXU dots and the XLA reference einsums.
    np.testing.assert_allclose(np.asarray(loss), np.asarray(loss_ref),
                               rtol=5e-4, atol=5e-4)

    print("KERNEL_OK")
</pallas_src>

<mosaic_0001>
module attributes {stable_mosaic.version = 11 : i64} {
  func.func @_vid_kernel(%arg0: i32, %arg1: i32, %arg2: memref<1x4x256xf32, #tpu.memory_space<vmem>>, %arg3: memref<1x6x256xf32, #tpu.memory_space<vmem>>, %arg4: memref<8x4xf32, #tpu.memory_space<vmem>>, %arg5: memref<8x8xf32, #tpu.memory_space<vmem>>, %arg6: memref<6x8xf32, #tpu.memory_space<vmem>>, %arg7: memref<1x6x1xf32, #tpu.memory_space<vmem>>, %arg8: memref<6x256xf32, #tpu.memory_space<vmem>>) attributes {dimension_semantics = [#tpu.dimension_semantics<parallel>, #tpu.dimension_semantics<arbitrary>], iteration_bounds = array<i64: 2, 1>, scalar_prefetch = 0 : i64, scratch_operands = 1 : i64, tpu.core_type = #tpu.core_type<tc>, window_params = [{transform_indices = @transform_0, window_bounds = array<i64: 1, 4, 256>}, {transform_indices = @transform_1, window_bounds = array<i64: 1, 6, 256>}, {pipeline_mode = #tpu.pipeline_mode<synchronous>, transform_indices = @transform_2, window_bounds = array<i64: 8, 4>}, {pipeline_mode = #tpu.pipeline_mode<synchronous>, transform_indices = @transform_3, window_bounds = array<i64: 8, 8>}, {pipeline_mode = #tpu.pipeline_mode<synchronous>, transform_indices = @transform_4, window_bounds = array<i64: 6, 8>}, {transform_indices = @transform_5, window_bounds = array<i64: 1, 6, 1>}]} {
    %c0_i32 = arith.constant 0 : i32
    %0 = arith.cmpi eq, %arg1, %c0_i32 : i32
    %1 = arith.extui %0 : i1 to i32
    %c0_i32_0 = arith.constant 0 : i32
    %2 = arith.cmpi ne, %1, %c0_i32_0 : i32
    scf.if %2 {
      %cst_22 = arith.constant 0.000000e+00 : f32
      %25 = vector.broadcast %cst_22 : f32 to vector<6x256xf32>
      %c0_23 = arith.constant 0 : index
      %c0_24 = arith.constant 0 : index
      %26 = vector.load %arg8[%c0_23, %c0_24] : memref<6x256xf32, #tpu.memory_space<vmem>>, vector<6x256xf32>
      tpu.vector_store %arg8[%c0_23, %c0_24], %25 {strides = array<i32>} : memref<6x256xf32, #tpu.memory_space<vmem>>, vector<6x256xf32>,
    } else {
    }
    %c0 = arith.constant 0 : index
    %c0_1 = arith.constant 0 : index
    %c0_2 = arith.constant 0 : index
    %3 = vector.load %arg2[%c0, %c0_1, %c0_2] : memref<1x4x256xf32, #tpu.memory_space<vmem>>, vector<1x4x256xf32>
    %4 = vector.shape_cast %3 : vector<1x4x256xf32> to vector<4x256xf32>
    %c0_3 = arith.constant 0 : index
    %c0_4 = arith.constant 0 : index
    %5 = vector.load %arg4[%c0_3, %c0_4] : memref<8x4xf32, #tpu.memory_space<vmem>>, vector<8x4xf32>
    %cst = arith.constant dense<0.000000e+00> : vector<8x256xf32>
    %6 = tpu.matmul %5, %4, %cst {dimension_numbers = #tpu.dot_dimension_numbers<[1], [0], [0], [1], [0, 0, 1, 1], [], []>} : vector<8x4xf32>, vector<4x256xf32>, vector<8x256xf32> -> vector<8x256xf32>
    %cst_5 = arith.constant 0.000000e+00 : f32
    %7 = vector.broadcast %cst_5 : f32 to vector<8x256xf32>
    %8 = arith.maximumf %6, %7 : vector<8x256xf32>
    %c0_6 = arith.constant 0 : index
    %c0_7 = arith.constant 0 : index
    %9 = vector.load %arg5[%c0_6, %c0_7] : memref<8x8xf32, #tpu.memory_space<vmem>>, vector<8x8xf32>
    %cst_8 = arith.constant dense<0.000000e+00> : vector<8x256xf32>
    %10 = tpu.matmul %9, %8, %cst_8 {dimension_numbers = #tpu.dot_dimension_numbers<[1], [0], [0], [1], [0, 0, 1, 1], [], []>} : vector<8x8xf32>, vector<8x256xf32>, vector<8x256xf32> -> vector<8x256xf32>
    %cst_9 = arith.constant 0.000000e+00 : f32
    %11 = vector.broadcast %cst_9 : f32 to vector<8x256xf32>
    %12 = arith.maximumf %10, %11 : vector<8x256xf32>
    %c0_10 = arith.constant 0 : index
    %c0_11 = arith.constant 0 : index
    %13 = vector.load %arg6[%c0_10, %c0_11] : memref<6x8xf32, #tpu.memory_space<vmem>>, vector<6x8xf32>
    %cst_12 = arith.constant dense<0.000000e+00> : vector<6x256xf32>
    %14 = tpu.matmul %13, %12, %cst_12 {dimension_numbers = #tpu.dot_dimension_numbers<[1], [0], [0], [1], [0, 0, 1, 1], [], []>} : vector<6x8xf32>, vector<8x256xf32>, vector<6x256xf32> -> vector<6x256xf32>
    %c0_13 = arith.constant 0 : index
    %c0_14 = arith.constant 0 : index
    %c0_15 = arith.constant 0 : index
    %15 = vector.load %arg3[%c0_13, %c0_14, %c0_15] : memref<1x6x256xf32, #tpu.memory_space<vmem>>, vector<1x6x256xf32>
    %16 = vector.shape_cast %15 : vector<1x6x256xf32> to vector<6x256xf32>
    %17 = arith.subf %14, %16 : vector<6x256xf32>
    %c0_16 = arith.constant 0 : index
    %c0_17 = arith.constant 0 : index
    %18 = vector.load %arg8[%c0_16, %c0_17] : memref<6x256xf32, #tpu.memory_space<vmem>>, vector<6x256xf32>
    %19 = arith.mulf %17, %17 : vector<6x256xf32>
    %20 = arith.addf %18, %19 : vector<6x256xf32>
    %c0_18 = arith.constant 0 : index
    %c0_19 = arith.constant 0 : index
    %21 = vector.load %arg8[%c0_18, %c0_19] : memref<6x256xf32, #tpu.memory_space<vmem>>, vector<6x256xf32>
    tpu.vector_store %arg8[%c0_18, %c0_19], %20 {strides = array<i32>} : memref<6x256xf32, #tpu.memory_space<vmem>>, vector<6x256xf32>,
    %c0_i32_20 = arith.constant 0 : i32
    %22 = arith.cmpi eq, %arg1, %c0_i32_20 : i32
    %23 = arith.extui %22 : i1 to i32
    %c0_i32_21 = arith.constant 0 : i32
    %24 = arith.cmpi ne, %23, %c0_i32_21 : i32
    scf.if %24 {
      %c0_22 = arith.constant 0 : index
      %c0_23 = arith.constant 0 : index
      %25 = vector.load %arg8[%c0_22, %c0_23] : memref<6x256xf32, #tpu.memory_space<vmem>>, vector<6x256xf32>
      %cst_24 = arith.constant dense<0.000000e+00> : vector<6xf32>
      %26 = vector.multi_reduction <add>, %25, %cst_24 [1] : vector<6x256xf32> to vector<6xf32>
      %27 = vector.shape_cast %26 : vector<6xf32> to vector<6x1xf32>
      %c0_25 = arith.constant 0 : index
      %c0_26 = arith.constant 0 : index
      %c0_27 = arith.constant 0 : index
      %28 = vector.load %arg7[%c0_25, %c0_26, %c0_27] : memref<1x6x1xf32, #tpu.memory_space<vmem>>, vector<1x6x1xf32>
      %29 = vector.shape_cast %28 : vector<1x6x1xf32> to vector<6x1xf32>
      %30 = vector.shape_cast %27 : vector<6x1xf32> to vector<1x6x1xf32>
      tpu.vector_store %arg7[%c0_25, %c0_26, %c0_27], %30 {strides = array<i32>} : memref<1x6x1xf32, #tpu.memory_space<vmem>>, vector<1x6x1xf32>,
    } else {
    }
    return
  }
  func.func @transform_0(%arg0: i32, %arg1: i32) -> (i32, i32, i32) {
    %c0_i32 = arith.constant 0 : i32
    %c0_i32_0 = arith.constant 0 : i32
    return %arg0, %c0_i32, %arg1 : i32, i32, i32
  }
  func.func @transform_1(%arg0: i32, %arg1: i32) -> (i32, i32, i32) {
    %c0_i32 = arith.constant 0 : i32
    %c0_i32_0 = arith.constant 0 : i32
    return %arg0, %c0_i32, %arg1 : i32, i32, i32
  }
  func.func @transform_2(%arg0: i32, %arg1: i32) -> (i32, i32) {
    %c0_i32 = arith.constant 0 : i32
    %c0_i32_0 = arith.constant 0 : i32
    %c0_i32_1 = arith.constant 0 : i32
    return %c0_i32, %c0_i32_0 : i32, i32
  }
  func.func @transform_3(%arg0: i32, %arg1: i32) -> (i32, i32) {
    %c0_i32 = arith.constant 0 : i32
    %c0_i32_0 = arith.constant 0 : i32
    %c0_i32_1 = arith.constant 0 : i32
    return %c0_i32, %c0_i32_0 : i32, i32
  }
  func.func @transform_4(%arg0: i32, %arg1: i32) -> (i32, i32) {
    %c0_i32 = arith.constant 0 : i32
    %c0_i32_0 = arith.constant 0 : i32
    %c0_i32_1 = arith.constant 0 : i32
    return %c0_i32, %c0_i32_0 : i32, i32
  }
  func.func @transform_5(%arg0: i32, %arg1: i32) -> (i32, i32, i32) {
    %c0_i32 = arith.constant 0 : i32
    %c0_i32_0 = arith.constant 0 : i32
    %c0_i32_1 = arith.constant 0 : i32
    return %arg0, %c0_i32, %c0_i32_0 : i32, i32, i32
  }
}

</mosaic_0001>

<llo_original>
// kernel: tpu_custom_call.1
$region0: #{tpu_custom_call.1}
  #allocation0 [shape = 'u32[]', space=smem, size = 0x4, offset = 0x4, fixed_abs, tag = 'smem constant byte address 0x4 - core index']
  #allocation1 [shape = 'u32[72,128]{1,0:T(1,128)}', space=vmem, size = 0x9000, scoped, tag = 'internal scratch']
  #allocation2 [shape = 'f32[6,256]{1,0:T(8,128)}', space=vmem, size = 0x2000, scoped, tag = 'scratch operand']
  %s0 = inlined_call_operand.vmem [shape: f32[2,4,256], index: 0, kind: input, shape index: {}]
  %s1 = inlined_call_operand.vmem [shape: f32[2,6,256], index: 1, kind: input, shape index: {}]
  %s2 = inlined_call_operand.vmem [shape: f32[8,4], index: 2, kind: input, shape index: {}]
  %s3 = inlined_call_operand.vmem [shape: f32[8,8], index: 3, kind: input, shape index: {}]
  %s4 = inlined_call_operand.vmem [shape: f32[6,8], index: 4, kind: input, shape index: {}]
  %s5 = inlined_call_operand.vmem [shape: f32[2,6,1], index: 5, kind: output, shape index: {}]
  %s6 = sld [smem:[#allocation0]]
  $region61: #{tpu_custom_call.1} parent=0
    _
  %s8 = ssub.s32 1, %s6
  %s9 = scalar_select 0, %s8, %s6
  loop: start=0, step=1, limit=4
  $region2: #{tpu_custom_call.1} parent=0 // loop_pre_header
    _
  $region3: #{tpu_custom_call.1} parent=0 // loop_header
    %s11 = sphi 0, %s15
    %p12 = scmp.ge.s32.totalorder %s11, 4
    %s18 = sphi 0, %s30
    %s19 = sphi 0, %s26
    %s20 = sphi 0, %s18
    %s21 = sphi 0, %s19
    %s22 = sphi 0, %s20
    %s23 = sphi 0, %s21
    %s35 = sphi 0, %s37
    %s38 = sphi 0, %s35
    %s39 = sphi 0, %s38
    %s55 = sphi 0, %s39
    %s63 = sphi 0, %s65
    %s66 = sphi 0, %s63
    %s67 = sphi 0, %s66
    %s83 = sphi 0, %s67
    %s87 = sphi 0, %s87
    %s89 = sphi 0, %s87
    %s90 = sphi 0, %s89
    %s104 = sphi 0, %s90
    %s108 = sphi 0, %s108
    %s110 = sphi 0, %s108
    %s111 = sphi 0, %s110
    %s125 = sphi 0, %s111
    %s129 = sphi 0, %s129
    %s131 = sphi 0, %s129
    %s132 = sphi 0, %s131
    %s146 = sphi 0, %s132
    %s152 = sphi 0, %s154
    %s155 = sphi 0, %s152
    %s156 = sphi 0, %s155
    %s172 = sphi 0, %s156
  $region4: #{tpu_custom_call.1} parent=0 // loop_header_branch
    %14 = sbr.rel (%p12) target = $region8
  $region5: #{tpu_custom_call.1} parent=0 // loop_body
    %s16 = ssub.s32 %s11, 1
    %s17 = ssub.s32 %s11, 2
    %s24 = sadd.s32 1, %s19
    %p25 = scmp.ge.s32.totalorder %s24, 1
    %s26 = scalar_select %p25, 0, %s24
    %s27 = sadd.s32 1, %s18
    %s28 = scalar_select %p25, %s27, %s18
    %p29 = scmp.ge.s32.totalorder %s28, 2
    %s30 = scalar_select %p29, 0, %s28
    %s31 = ssub.s32 %s18, %s30
    %s32 = ssub.s32 %s19, %s26
    %s33 = sor.u32 %s31, %s32
    %p34 = scmp.eq.s32.totalorder %s33, 0
    %s36 = sadd.s32 %s35, 1
    %s37 = scalar_select %p34, %s35, %s36
    %p40 = pneg %p34
    %p41 = scmp.eq.s32.totalorder %s11, 1
    %p42 = por %p40, %p41
    %p43 = scmp.ne.s32.totalorder %s35, %s38
    %p44 = scmp.eq.s32.totalorder %s11, 0
    %p45 = por %p43, %p44
    %p46 = scmp.ne.s32.totalorder %s35, %s38
    %p47 = scmp.eq.s32.totalorder %s16, 1
    %p48 = por %p46, %p47
    %p49 = scmp.ne.s32.totalorder %s38, %s39
    %p50 = scmp.eq.s32.totalorder %s16, 0
    %p51 = por %p49, %p50
    %p52 = scmp.ne.s32.totalorder %s38, %s39
    %p53 = scmp.eq.s32.totalorder %s17, 1
    %p54 = por %p52, %p53
    %p56 = scmp.ne.s32.totalorder %s39, %s55
    %p57 = scmp.eq.s32.totalorder %s17, 0
    %p58 = por %p56, %p57
    %s59 = ssub.s32 %s18, %s30
    %s60 = ssub.s32 %s19, %s26
    %s61 = sor.u32 %s59, %s60
    %p62 = scmp.eq.s32.totalorder %s61, 0
    %s64 = sadd.s32 %s63, 1
    %s65 = scalar_select %p62, %s63, %s64
    %p68 = pneg %p62
    %p69 = scmp.eq.s32.totalorder %s11, 1
    %p70 = por %p68, %p69
    %p71 = scmp.ne.s32.totalorder %s63, %s66
    %p72 = scmp.eq.s32.totalorder %s11, 0
    %p73 = por %p71, %p72
    %p74 = scmp.ne.s32.totalorder %s63, %s66
    %p75 = scmp.eq.s32.totalorder %s16, 1
    %p76 = por %p74, %p75
    %p77 = scmp.ne.s32.totalorder %s66, %s67
    %p78 = scmp.eq.s32.totalorder %s16, 0
    %p79 = por %p77, %p78
    %p80 = scmp.ne.s32.totalorder %s66, %s67
    %p81 = scmp.eq.s32.totalorder %s17, 1
    %p82 = por %p80, %p81
    %p84 = scmp.ne.s32.totalorder %s67, %s83
    %p85 = scmp.eq.s32.totalorder %s17, 0
    %p86 = por %p84, %p85
    %s88 = sadd.s32 %s87, 1
    %p91 = scmp.eq.s32.totalorder %s11, 1
    %p92 = scmp.ne.s32.totalorder %s87, %s89
    %p93 = scmp.eq.s32.totalorder %s11, 0
    %p94 = por %p92, %p93
    %p95 = scmp.ne.s32.totalorder %s87, %s89
    %p96 = scmp.eq.s32.totalorder %s16, 1
    %p97 = por %p95, %p96
    %p98 = scmp.ne.s32.totalorder %s89, %s90
    %p99 = scmp.eq.s32.totalorder %s16, 0
    %p100 = por %p98, %p99
    %p101 = scmp.ne.s32.totalorder %s89, %s90
    %p102 = scmp.eq.s32.totalorder %s17, 1
    %p103 = por %p101, %p102
    %p105 = scmp.ne.s32.totalorder %s90, %s104
    %p106 = scmp.eq.s32.totalorder %s17, 0
    %p107 = por %p105, %p106
    %s109 = sadd.s32 %s108, 1
    %p112 = scmp.eq.s32.totalorder %s11, 1
    %p113 = scmp.ne.s32.totalorder %s108, %s110
    %p114 = scmp.eq.s32.totalorder %s11, 0
    %p115 = por %p113, %p114
    %p116 = scmp.ne.s32.totalorder %s108, %s110
    %p117 = scmp.eq.s32.totalorder %s16, 1
    %p118 = por %p116, %p117
    %p119 = scmp.ne.s32.totalorder %s110, %s111
    %p120 = scmp.eq.s32.totalorder %s16, 0
    %p121 = por %p119, %p120
    %p122 = scmp.ne.s32.totalorder %s110, %s111
    %p123 = scmp.eq.s32.totalorder %s17, 1
    %p124 = por %p122, %p123
    %p126 = scmp.ne.s32.totalorder %s111, %s125
    %p127 = scmp.eq.s32.totalorder %s17, 0
    %p128 = por %p126, %p127
    %s130 = sadd.s32 %s129, 1
    %p133 = scmp.eq.s32.totalorder %s11, 1
    %p134 = scmp.ne.s32.totalorder %s129, %s131
    %p135 = scmp.eq.s32.totalorder %s11, 0
    %p136 = por %p134, %p135
    %p137 = scmp.ne.s32.totalorder %s129, %s131
    %p138 = scmp.eq.s32.totalorder %s16, 1
    %p139 = por %p137, %p138
    %p140 = scmp.ne.s32.totalorder %s131, %s132
    %p141 = scmp.eq.s32.totalorder %s16, 0
    %p142 = por %p140, %p141
    %p143 = scmp.ne.s32.totalorder %s131, %s132
    %p144 = scmp.eq.s32.totalorder %s17, 1
    %p145 = por %p143, %p144
    %p147 = scmp.ne.s32.totalorder %s132, %s146
    %p148 = scmp.eq.s32.totalorder %s17, 0
    %p149 = por %p147, %p148
    %s150 = ssub.s32 %s18, %s30
    %p151 = scmp.eq.s32.totalorder %s150, 0
    %s153 = sadd.s32 %s152, 1
    %s154 = scalar_select %p151, %s152, %s153
    %p157 = pneg %p151
    %p158 = scmp.eq.s32.totalorder %s11, 1
    %p159 = por %p157, %p158
    %p160 = scmp.ne.s32.totalorder %s152, %s155
    %p161 = scmp.eq.s32.totalorder %s11, 0
    %p162 = por %p160, %p161
    %p163 = scmp.ne.s32.totalorder %s152, %s155
    %p164 = scmp.eq.s32.totalorder %s16, 1
    %p165 = por %p163, %p164
    %p166 = scmp.ne.s32.totalorder %s155, %s156
    %p167 = scmp.eq.s32.totalorder %s16, 0
    %p168 = por %p166, %p167
    %p169 = scmp.ne.s32.totalorder %s155, %s156
    %p170 = scmp.eq.s32.totalorder %s17, 1
    %p171 = por %p169, %p170
    %p173 = scmp.ne.s32.totalorder %s156, %s172
    %p174 = scmp.eq.s32.totalorder %s17, 0
    %p175 = por %p173, %p174
    %p176 = scmp.le.s32.totalorder 1, %s11
    %p177 = scmp.lt.s32.totalorder %s11, 3
    %p178 = pnand %p176, %p177
    %p179 = pneg %p178
    // Predicated region
    $region9: #{tpu_custom_call.1} parent=5 // pred_check
      _
    $region10: #{tpu_custom_call.1} parent=5 // pred_check_branch
      %181 = sbr.rel (%p178) target = $region12
    $region11: #{tpu_custom_call.1} parent=5 // pred_region
      %s182 = ssub.s32 %s11, 1
      // Predicated region
      $region13: #{tpu_custom_call.1} parent=11 // pred_check
        %p183 = pneg %p100
      $region14: #{tpu_custom_call.1} parent=11 // pred_check_branch
        %185 = sbr.rel (%p183) target = $region16
      $region15: #{tpu_custom_call.1} parent=11 // pred_region
        _
      $region16: #{tpu_custom_call.1} parent=11 // pred_fallthru
        _
      // Predicated region
      $region17: #{tpu_custom_call.1} parent=11 // pred_check
        %p186 = pneg %p121
      $region18: #{tpu_custom_call.1} parent=11 // pred_check_branch
        %188 = sbr.rel (%p186) target = $region20
      $region19: #{tpu_custom_call.1} parent=11 // pred_region
        _
      $region20: #{tpu_custom_call.1} parent=11 // pred_fallthru
        _
      // Predicated region
      $region21: #{tpu_custom_call.1} parent=11 // pred_check
        %p189 = pneg %p142
      $region22: #{tpu_custom_call.1} parent=11 // pred_check_branch
        %191 = sbr.rel (%p189) target = $region24
      $region23: #{tpu_custom_call.1} parent=11 // pred_region
        _
      $region24: #{tpu_custom_call.1} parent=11 // pred_fallthru
        _
    $region12: #{tpu_custom_call.1} parent=5 // pred_fallthru
      _
    %p192 = scmp.lt.s32.totalorder %s11, 2
    // Predicated region
    $region25: #{tpu_custom_call.1} parent=5 // pred_check
      %p193 = pneg %p192
    $region26: #{tpu_custom_call.1} parent=5 // pred_check_branch
      %195 = sbr.rel (%p193) target = $region28
    $region27: #{tpu_custom_call.1} parent=5 // pred_region
      // Predicated region
      $region29: #{tpu_custom_call.1} parent=27 // pred_check
        %p196 = pneg %p45
      $region30: #{tpu_custom_call.1} parent=27 // pred_check_branch
        %198 = sbr.rel (%p196) target = $region32
      $region31: #{tpu_custom_call.1} parent=27 // pred_region
        %s199 = smul.u32 2, %s19
        %p200 = scmp.lt.s32.totalorder %s18, 1
        %s201 = scalar_select %p200, %s18, 1
        %p202 = scmp.lt.s32.totalorder %s199, 1
        %s203 = scalar_select %p202, %s199, 1
        %s204 = smul.addr %s201, 2
        %s205 = sadd.s32 %s203, %s204
        %s206 = smul.addr %s205, 4
        %s207 = scalar_lea.vmem %s0, %s206
        %s208 = smul.u32 2, %s19
      $region32: #{tpu_custom_call.1} parent=27 // pred_fallthru
        _
      // Predicated region
      $region33: #{tpu_custom_call.1} parent=27 // pred_check
        %p209 = pneg %p73
      $region34: #{tpu_custom_call.1} parent=27 // pred_check_branch
        %211 = sbr.rel (%p209) target = $region36
      $region35: #{tpu_custom_call.1} parent=27 // pred_region
        %s212 = smul.u32 2, %s19
        %p213 = scmp.lt.s32.totalorder %s18, 1
        %s214 = scalar_select %p213, %s18, 1
        %p215 = scmp.lt.s32.totalorder %s212, 1
        %s216 = scalar_select %p215, %s212, 1
        %s217 = smul.addr %s214, 2
        %s218 = sadd.s32 %s216, %s217
        %s219 = smul.addr %s218, 8
        %s220 = scalar_lea.vmem %s1, %s219
        %s221 = smul.u32 2, %s19
      $region36: #{tpu_custom_call.1} parent=27 // pred_fallthru
        _
    $region28: #{tpu_custom_call.1} parent=5 // pred_fallthru
      _
    %p222 = scmp.le.s32.totalorder 1, %s11
    %p223 = scmp.lt.s32.totalorder %s11, 3
    %p224 = pnand %p222, %p223
    %p225 = pneg %p224
    // Predicated region
    $region37: #{tpu_custom_call.1} parent=5 // pred_check
      _
    $region38: #{tpu_custom_call.1} parent=5 // pred_check_branch
      %227 = sbr.rel (%p224) target = $region40
    $region39: #{tpu_custom_call.1} parent=5 // pred_region
      %s228 = ssub.s32 %s11, 1
      %s229 = smul.u32 2, %s21
      %p230 = scmp.lt.s32.totalorder %s20, 1
      %s231 = scalar_select %p230, %s20, 1
      %p232 = scmp.lt.s32.totalorder %s229, 1
      %s233 = scalar_select %p232, %s229, 1
      %s234 = smul.addr %s231, 2
      %s235 = sadd.s32 %s233, %s234
      %s236 = smul.addr %s235, 4
      %s237 = scalar_lea.vmem %s0, %s236
      %p238 = pneg %p51
      %p239 = pneg %p48
      %s240 = smul.u32 2, %s21
      %p241 = scmp.lt.s32.totalorder %s20, 1
      %s242 = scalar_select %p241, %s20, 1
      %p243 = scmp.lt.s32.totalorder %s240, 1
      %s244 = scalar_select %p243, %s240, 1
      %s245 = smul.addr %s242, 2
      %s246 = sadd.s32 %s244, %s245
      %s247 = smul.addr %s246, 8
      %s248 = scalar_lea.vmem %s1, %s247
      %p249 = pneg %p79
      %p250 = pneg %p76
      %p251 = pneg %p100
      %p252 = pneg %p97
      %p253 = pneg %p121
      %p254 = pneg %p118
      %p255 = pneg %p142
      %p256 = pneg %p139
      %p257 = pneg %p168
      %p258 = pneg %p165
      %p259 = scmp.lt.s32.totalorder %s20, 1
      %s260 = scalar_select %p259, %s20, 1
      %s261 = smul.addr %s260, 8
      %s262 = scalar_lea.vmem %s5, %s261
      %s263 = smul.u32 2, %s21
      %p264 = scmp.lt.s32.totalorder %s20, 1
      %s265 = scalar_select %p264, %s20, 1
      %p266 = scmp.lt.s32.totalorder %s263, 1
      %s267 = scalar_select %p266, %s263, 1
      %s268 = smul.addr %s265, 2
      %s269 = sadd.s32 %s267, %s268
      %s270 = smul.addr %s269, 4
      %s271 = scalar_lea.vmem %s0, %s270
      %s272 = smul.u32 2, %s21
      %s273 = smul.u32 2, %s21
      %p274 = scmp.lt.s32.totalorder %s20, 1
      %s275 = scalar_select %p274, %s20, 1
      %p276 = scmp.lt.s32.totalorder %s273, 1
      %s277 = scalar_select %p276, %s273, 1
      %s278 = smul.addr %s275, 2
      %s279 = sadd.s32 %s277, %s278
      %s280 = smul.addr %s279, 8
      %s281 = scalar_lea.vmem %s1, %s280
      %s282 = smul.u32 2, %s21
      %p283 = scmp.lt.s32.totalorder %s20, 1
      %s284 = scalar_select %p283, %s20, 1
      %s285 = smul.addr %s284, 8
      %s286 = scalar_lea.vmem %s5, %s285
      %p287 = scmp.eq.s32.totalorder %s21, 0
      // Predicated region
      $region41: #{tpu_custom_call.1} parent=39 // pred_check
        %p288 = pneg %p287
      $region42: #{tpu_custom_call.1} parent=39 // pred_check_branch
        %290 = sbr.rel (%p288) target = $region44
      $region43: #{tpu_custom_call.1} parent=39 // pred_region
        %291 = vst [vmem:[#allocation2] sm:$0x3f] 0.0
        %292 = vst [vmem:[#allocation2 + $0x8] sm:$0x3f] 0.0
      $region44: #{tpu_custom_call.1} parent=39 // pred_fallthru
        _
      %v293 = vld [vmem:[%s271] sm:$0xff]
      %v294 = vld [vmem:[%s2] sm:$0xff]
      %296 = vst [vmem:[#allocation1] ss:$2 sm:$0xff] %v293
      %v297 = vld.sshfl [vmem:[#allocation1] sm:$0xff pattern:$0x75316420]
      %v298 = vld.sshfl [vmem:[#allocation1 + $0x8] sm:$0xff pattern:$0x75316420]
      %vm299 = vcmask 31744
      %v301 = vsel %vm299, %v294, 0
      %vm303 = vcmask 1043456
      %v304 = vsel %vm303, %v297, 0
      %v306 = vsel %vm303, %v298, 0
      %308 = vmatpush.msra.mxu0 0.0
      %309 = vmatpush.msra.mxu0 0.0
      %310 = vmatpush.msra.mxu0 0.0
      %311 = vmatpush.msra.mxu0 0.0
      %312 = vmatpush.msra.mxu0 0.0
      %313 = vmatpush.msra.mxu0 0.0
      %314 = vmatpush.msra.mxu0 0.0
      %315 = vmatpush.msra.mxu0 0.0
      %316 = vmatpush.msra.mxu0 0.0
      %317 = vmatpush.msra.mxu0 0.0
      %318 = vmatpush.msra.mxu0 0.0
      %319 = vmatpush.msra.mxu0 0.0
      %320 = vmatpush.msra.mxu0 0.0
      %321 = vmatpush.msra.mxu0 0.0
      %322 = vmatpush.msra.mxu0 0.0
      %323 = vmatpush.msra.mxu0 %v304
      %324 = vmatmul.f32.gmra.mxu0 %v301
      %v325 = vpop.f32.mrf.mxu0
      %v326 = vadd.f32 0.0, %v325
      %327 = vdwg.mxu0
      %328 = vmatpush.msra.mxu0 0.0
      %329 = vmatpush.msra.mxu0 0.0
      %330 = vmatpush.msra.mxu0 0.0
      %331 = vmatpush.msra.mxu0 0.0
      %332 = vmatpush.msra.mxu0 0.0
      %333 = vmatpush.msra.mxu0 0.0
      %334 = vmatpush.msra.mxu0 0.0
      %335 = vmatpush.msra.mxu0 0.0
      %336 = vmatpush.msra.mxu0 0.0
      %337 = vmatpush.msra.mxu0 0.0
      %338 = vmatpush.msra.mxu0 0.0
      %339 = vmatpush.msra.mxu0 0.0
      %340 = vmatpush.msra.mxu0 0.0
      %341 = vmatpush.msra.mxu0 0.0
      %342 = vmatpush.msra.mxu0 0.0
      %343 = vmatpush.msra.mxu0 %v306
      %344 = vmatmul.f32.gmra.mxu0 %v301
      %v345 = vpop.f32.mrf.mxu0
      %v346 = vadd.f32 0.0, %v345
      %347 = vdwg.mxu0
      %v348 = vmax.f32 %v326, 0.0
      %v349 = vmax.f32 %v346, 0.0
      %v350 = vld [vmem:[%s3] sm:$0xff]
      %vm351 = vcmask 64512
      %v353 = vsel %vm351, %v350, 0
      %355 = vmatpush.msra.mxu0 0.0
      %356 = vmatpush.msra.mxu0 0.0
      %357 = vmatpush.msra.mxu0 0.0
      %358 = vmatpush.msra.mxu0 0.0
      %359 = vmatpush.msra.mxu0 0.0
      %360 = vmatpush.msra.mxu0 0.0
      %361 = vmatpush.msra.mxu0 0.0
      %362 = vmatpush.msra.mxu0 0.0
      %363 = vmatpush.msra.mxu0 0.0
      %364 = vmatpush.msra.mxu0 0.0
      %365 = vmatpush.msra.mxu0 0.0
      %366 = vmatpush.msra.mxu0 0.0
      %367 = vmatpush.msra.mxu0 0.0
      %368 = vmatpush.msra.mxu0 0.0
      %369 = vmatpush.msra.mxu0 0.0
      %370 = vmatpush.msra.mxu0 %v348
      %371 = vmatmul.f32.gmra.mxu0 %v353
      %v372 = vpop.f32.mrf.mxu0
      %v373 = vadd.f32 0.0, %v372
      %374 = vdwg.mxu0
      %375 = vmatpush.msra.mxu0 0.0
      %376 = vmatpush.msra.mxu0 0.0
      %377 = vmatpush.msra.mxu0 0.0
      %378 = vmatpush.msra.mxu0 0.0
      %379 = vmatpush.msra.mxu0 0.0
      %380 = vmatpush.msra.mxu0 0.0
      %381 = vmatpush.msra.mxu0 0.0
      %382 = vmatpush.msra.mxu0 0.0
      %383 = vmatpush.msra.mxu0 0.0
      %384 = vmatpush.msra.mxu0 0.0
      %385 = vmatpush.msra.mxu0 0.0
      %386 = vmatpush.msra.mxu0 0.0
      %387 = vmatpush.msra.mxu0 0.0
      %388 = vmatpush.msra.mxu0 0.0
      %389 = vmatpush.msra.mxu0 0.0
      %390 = vmatpush.msra.mxu0 %v349
      %391 = vmatmul.f32.gmra.mxu0 %v353
      %v392 = vpop.f32.mrf.mxu0
      %v393 = vadd.f32 0.0, %v392
      %394 = vdwg.mxu0
      %v395 = vmax.f32 %v373, 0.0
      %v396 = vmax.f32 %v393, 0.0
      %v397 = vld [vmem:[%s4] sm:$0x3f]
      %v399 = vsel %vm351, %v397, 0
      %401 = vmatpush.msra.mxu0 0.0
      %402 = vmatpush.msra.mxu0 0.0
      %403 = vmatpush.msra.mxu0 0.0
      %404 = vmatpush.msra.mxu0 0.0
      %405 = vmatpush.msra.mxu0 0.0
      %406 = vmatpush.msra.mxu0 0.0
      %407 = vmatpush.msra.mxu0 0.0
      %408 = vmatpush.msra.mxu0 0.0
      %409 = vmatpush.msra.mxu0 0.0
      %410 = vmatpush.msra.mxu0 0.0
      %411 = vmatpush.msra.mxu0 0.0
      %412 = vmatpush.msra.mxu0 0.0
      %413 = vmatpush.msra.mxu0 0.0
      %414 = vmatpush.msra.mxu0 0.0
      %415 = vmatpush.msra.mxu0 0.0
      %416 = vmatpush.msra.mxu0 %v395
      %417 = vmatmul.f32.gmra.mxu0 %v399
      %v418 = vpop.f32.mrf.mxu0
      %v419 = vadd.f32 0.0, %v418
      %420 = vdwg.mxu0
      %421 = vmatpush.msra.mxu0 0.0
      %422 = vmatpush.msra.mxu0 0.0
      %423 = vmatpush.msra.mxu0 0.0
      %424 = vmatpush.msra.mxu0 0.0
      %425 = vmatpush.msra.mxu0 0.0
      %426 = vmatpush.msra.mxu0 0.0
      %427 = vmatpush.msra.mxu0 0.0
      %428 = vmatpush.msra.mxu0 0.0
      %429 = vmatpush.msra.mxu0 0.0
      %430 = vmatpush.msra.mxu0 0.0
      %431 = vmatpush.msra.mxu0 0.0
      %432 = vmatpush.msra.mxu0 0.0
      %433 = vmatpush.msra.mxu0 0.0
      %434 = vmatpush.msra.mxu0 0.0
      %435 = vmatpush.msra.mxu0 0.0
      %436 = vmatpush.msra.mxu0 %v396
      %437 = vmatmul.f32.gmra.mxu0 %v399
      %v438 = vpop.f32.mrf.mxu0
      %v439 = vadd.f32 0.0, %v438
      %440 = vdwg.mxu0
      %v441 = vld [vmem:[%s281] sm:$0x3f]
      %v442 = vld [vmem:[%s281 + $0x8] sm:$0x3f]
      %v443 = vsub.f32 %v419, %v441
      %v444 = vsub.f32 %v439, %v442
      %v445 = vld [vmem:[#allocation2] sm:$0x3f]
      %v446 = vld [vmem:[#allocation2 + $0x8] sm:$0x3f]
      %v447 = vmul.f32 %v443, %v443
      %v448 = vmul.f32 %v444, %v444
      %v449 = vadd.f32 %v445, %v447
      %v450 = vadd.f32 %v446, %v448
      %451 = vst [vmem:[#allocation2] sm:$0x3f] %v449
      %452 = vst [vmem:[#allocation2 + $0x8] sm:$0x3f] %v450
      // Predicated region
      $region45: #{tpu_custom_call.1} parent=39 // pred_check
        %p453 = pneg %p287
      $region46: #{tpu_custom_call.1} parent=39 // pred_check_branch
        %455 = sbr.rel (%p453) target = $region48
      $region47: #{tpu_custom_call.1} parent=39 // pred_region
        %v456 = vld [vmem:[#allocation2] sm:$0x3f]
        %v457 = vld [vmem:[#allocation2 + $0x8] sm:$0x3f]
        %vm458 = vcmask 1045504
        %v459 = vsel %vm458, %v456, 0.0
        %v460 = vsel %vm458, %v457, 0.0
        %v461 = vadd.f32 %v459, %v460
        %462 = vadd.xlane.f32.xlu0 %v461
        %v463 = vpop.xlane.xlu0 %462
        %vm464 = vcmask 5120
        %465 = vst.msk [vmem:[%s286] sm:$0x3f] %vm464, %v463
      $region48: #{tpu_custom_call.1} parent=39 // pred_fallthru
        _
      %p466 = scmp.lt.s32.totalorder %s20, 1
      %s467 = scalar_select %p466, %s20, 1
      %s468 = smul.addr %s467, 8
      %s469 = scalar_lea.vmem %s5, %s468
      // Predicated region
      $region49: #{tpu_custom_call.1} parent=39 // pred_check
        %p470 = pneg %p165
      $region50: #{tpu_custom_call.1} parent=39 // pred_check_branch
        %472 = sbr.rel (%p470) target = $region52
      $region51: #{tpu_custom_call.1} parent=39 // pred_region
        _
      $region52: #{tpu_custom_call.1} parent=39 // pred_fallthru
        _
    $region40: #{tpu_custom_call.1} parent=5 // pred_fallthru
      _
    %p473 = scmp.le.s32.totalorder 2, %s11
    // Predicated region
    $region53: #{tpu_custom_call.1} parent=5 // pred_check
      %p474 = pneg %p473
    $region54: #{tpu_custom_call.1} parent=5 // pred_check_branch
      %476 = sbr.rel (%p474) target = $region56
    $region55: #{tpu_custom_call.1} parent=5 // pred_region
      %s477 = ssub.s32 %s11, 2
      // Predicated region
      $region57: #{tpu_custom_call.1} parent=55 // pred_check
        %p478 = pneg %p171
      $region58: #{tpu_custom_call.1} parent=55 // pred_check_branch
        %480 = sbr.rel (%p478) target = $region60
      $region59: #{tpu_custom_call.1} parent=55 // pred_region
        %p481 = scmp.lt.s32.totalorder %s22, 1
        %s482 = scalar_select %p481, %s22, 1
        %s483 = smul.addr %s482, 8
        %s484 = scalar_lea.vmem %s5, %s483
      $region60: #{tpu_custom_call.1} parent=55 // pred_fallthru
        _
    $region56: #{tpu_custom_call.1} parent=5 // pred_fallthru
      _
  $region6: #{tpu_custom_call.1} parent=0 // loop_footer
    %s15 = sadd.s32 1, %s11
  $region7: #{tpu_custom_call.1} parent=0 // loop_footer_branch
    %10 = sbr.rel target = $region3
  $region8: #{tpu_custom_call.1} parent=0 // loop_exit
    _

</llo_original>
